<compile_context>
chip_gen: v7x
topology: tpu7x:2x2x1
jax: 0.10.0
libtpu: 0.0.40
codegen_flags: <defaults>
</compile_context>

<pallas_src>
import functools

import jax
import jax.numpy as jnp
from jax import lax
from jax.experimental import pallas as pl
from jax.experimental.pallas import tpu as pltpu


def _pool_kernel(v_ref, a_ref, w_ref, out_v_ref, out_a_ref, *,
                 n_node, n_out, n_edge, bb):
    """Per grid step: pools `bb` whole graphs.

    v_ref:     (bb, N, F)      float
    a_ref:     (bb, N, M*N)    float (contiguous per-graph slab)
    w_ref:     (K, F)          float (Linear weight; bias cancels in softmax)
    out_v_ref: (bb, K, F)      f32
    out_a_ref: (bb, K, M*K)    f32 (lane-dense; wrapper reshapes to (B,K,M,K))
    """
    N, K, M = n_node, n_out, n_edge
    W = w_ref[...].astype(jnp.float32)                                   # (K, F)

    # bb is small by construction -> statically unrolled per-graph loop.
    for b in range(bb):
        V = v_ref[b].astype(jnp.float32)                                 # (N, F)
        A = a_ref[b].astype(jnp.float32)                                 # (N, M*N)

        # logits = V @ W^T   (bias omitted: constant along softmax axis)
        logits = lax.dot_general(V, W, (((1,), (1,)), ((), ())),
                                 preferred_element_type=jnp.float32)     # (N, K)

        # softmax over the node axis (axis 0 here)
        mx = jnp.max(logits, axis=0, keepdims=True)
        e = jnp.exp(logits - mx)
        denom = jnp.sum(e, axis=0, keepdims=True)
        S = e * pl.reciprocal(denom, approx=True)                        # (N, K)

        # out_V = S^T @ V
        out_v_ref[b] = lax.dot_general(S, V, (((0,), (0,)), ((), ())),
                                       preferred_element_type=jnp.float32)  # (K, F)

        # Fused node contraction (the dominant matmul, lane-dense output):
        #   U[k, m*N + j] = sum_i S[i, k] * A[i, m*N + j]
        U = lax.dot_general(S, A, (((0,), (0,)), ((), ())),
                            preferred_element_type=jnp.float32)          # (K, M*N)

        # Second (small) contraction per edge slice, gathered into one
        # lane-dense (K, M*K) slab so out_A is written with a single store.
        oa = []
        for m in range(M):
            U_m = U[:, m * N:(m + 1) * N]                                # (K, N)
            oa.append(jnp.dot(U_m, S,
                              preferred_element_type=jnp.float32))       # (K, K)
        out_a_ref[b] = jnp.concatenate(oa, axis=1)                       # (K, M*K)


def _pool_v_only_kernel(v_ref, w_ref, out_v_ref, *, bb):
    """output_node == 1 path: A is never touched; only out_V is produced."""
    W = w_ref[...].astype(jnp.float32)                                   # (1, F)
    for b in range(bb):
        V = v_ref[b].astype(jnp.float32)                                 # (N, F)
        logits = lax.dot_general(V, W, (((1,), (1,)), ((), ())),
                                 preferred_element_type=jnp.float32)     # (N, 1)
        mx = jnp.max(logits, axis=0, keepdims=True)
        e = jnp.exp(logits - mx)
        S = e * pl.reciprocal(jnp.sum(e, axis=0, keepdims=True), approx=True)
        out_v_ref[b] = lax.dot_general(S, V, (((0,), (0,)), ((), ())),
                                       preferred_element_type=jnp.float32)  # (1, F)


def _pick_batch_block(batch, per_graph_bytes, budget_bytes=4 * 1024 * 1024):
    """Largest divisor of `batch` whose per-copy slab fits a VMEM budget."""
    bb = int(max(1, min(batch, budget_bytes // max(per_graph_bytes, 1))))
    while batch % bb:
        bb -= 1
    return bb


def make_node_pooling_forward(V, A, W, b=None, *, output_node, a_dtype=None):
    """Pallas equivalent of make_node_pooling(input_feature, output_node).forward(V, A).

    V: (B, N, F), A: (B, N, M, N), W: (K, F) Linear weight, b: (K,) Linear bias.
    The bias is accepted for API parity but is mathematically a no-op (it is
    constant along the softmax axis), so it is never sent to the kernel.
    """
    del b  # cancels exactly in the softmax over the node axis
    B, N, F = V.shape
    K = output_node
    V = V.astype(jnp.float32)
    W = W.astype(jnp.float32)
    vmem_params = pltpu.CompilerParams(
        dimension_semantics=("parallel",),
        vmem_limit_bytes=32 * 1024 * 1024,
    )

    if K == 1:
        # PyTorch branch: output_V.reshape(-1, F) and A returned untouched.
        # A is neither DMA'd nor pooled.
        bb = _pick_batch_block(B, N * F * 4)
        out_V = pl.pallas_call(
            functools.partial(_pool_v_only_kernel, bb=bb),
            out_shape=jax.ShapeDtypeStruct((B, 1, F), jnp.float32),
            grid_spec=pltpu.PrefetchScalarGridSpec(
                num_scalar_prefetch=0,
                grid=(B // bb,),
                in_specs=[
                    pl.BlockSpec((bb, N, F), lambda i: (i, 0, 0)),
                    pl.BlockSpec((1, F), lambda i: (0, 0)),
                ],
                out_specs=pl.BlockSpec((bb, 1, F), lambda i: (i, 0, 0)),
            ),
            compiler_params=vmem_params,
            cost_estimate=pl.CostEstimate(
                flops=int(B * (2 * N * F + 2 * N * F)),
                transcendentals=int(B * N),
                bytes_accessed=int(V.size * 4 + W.size * 4 + B * F * 4)),
        )(V, W)
        return out_V.reshape(-1, F), A

    _, _, M, _ = A.shape
    a_dtype = jnp.float32 if a_dtype is None else a_dtype
    a_bytes = jnp.dtype(a_dtype).itemsize
    # Free, layout-only reshape: per-graph A becomes one contiguous (N, M*N) slab.
    A_flat = A.reshape(B, N, M * N).astype(a_dtype)

    per_graph_bytes = N * M * N * a_bytes + N * F * 4
    bb = _pick_batch_block(B, per_graph_bytes)

    flops = B * (2 * N * F * K        # linear
                 + 2 * K * N * F      # S^T V
                 + 2 * K * N * M * N  # S^T A (dominant)
                 + 2 * M * K * N * K)  # (S^T A) S
    bytes_accessed = (V.size * 4 + A_flat.size * a_bytes + W.size * 4
                      + B * K * F * 4 + B * K * M * K * 4)

    out_V, out_A2 = pl.pallas_call(
        functools.partial(_pool_kernel, n_node=N, n_out=K, n_edge=M, bb=bb),
        out_shape=(jax.ShapeDtypeStruct((B, K, F), jnp.float32),
                   jax.ShapeDtypeStruct((B, K, M * K), jnp.float32)),
        grid_spec=pltpu.PrefetchScalarGridSpec(
            num_scalar_prefetch=0,
            grid=(B // bb,),
            in_specs=[
                pl.BlockSpec((bb, N, F), lambda i: (i, 0, 0)),
                pl.BlockSpec((bb, N, M * N), lambda i: (i, 0, 0)),
                pl.BlockSpec((K, F), lambda i: (0, 0)),
            ],
            out_specs=[
                pl.BlockSpec((bb, K, F), lambda i: (i, 0, 0)),
                pl.BlockSpec((bb, K, M * K), lambda i: (i, 0, 0)),
            ],
        ),
        compiler_params=vmem_params,
        cost_estimate=pl.CostEstimate(
            flops=int(flops),
            transcendentals=int(B * N * K),
            bytes_accessed=int(bytes_accessed)),
    )(V, A_flat, W)

    # Kernel emitted a lane-dense (K, M*K) slab per graph; split back for free.
    out_A = out_A2.reshape(B, K, M, K)
    return out_V, out_A


def _ref_forward(V, A, W, b, output_node):
    """Pure-JAX reference reproducing the PyTorch semantics (with bias)."""
    logits = jnp.einsum('bnf,kf->bnk', V, W) + b[None, None, :]
    S = jax.nn.softmax(logits, axis=1)
    out_V = jnp.einsum('bnk,bnf->bkf', S, V)
    if output_node == 1:
        return out_V.reshape(-1, V.shape[-1]), A
    out_A = jnp.einsum('bik,bimj,bjl->bkml', S, A, S)
    return out_V, out_A


if __name__ == "__main__":
    # small shapes: batch=2, nodes=16, input_feature=32, output_node=4, edge-slices=2
    B, N, F, K, M = 2, 16, 32, 4, 2

    key = jax.random.PRNGKey(0)
    kV, kA, kW, kb, kW1, kb1 = jax.random.split(key, 6)
    V = jax.random.normal(kV, (B, N, F), dtype=jnp.float32)
    A = jax.random.normal(kA, (B, N, M, N), dtype=jnp.float32)
    bound = 1.0 / (F ** 0.5)
    W = jax.random.uniform(kW, (K, F), minval=-bound, maxval=bound, dtype=jnp.float32)
    bias = jax.random.uniform(kb, (K,), minval=-bound, maxval=bound, dtype=jnp.float32)

    # --- output_node = K path, f32 ---
    out_V, out_A = make_node_pooling_forward(V, A, W, bias, output_node=K)
    jax.block_until_ready((out_V, out_A))
    ref_V, ref_A = _ref_forward(V, A, W, bias, K)
    assert out_V.shape == (B, K, F) and out_A.shape == (B, K, M, K)
    assert jnp.allclose(out_V, ref_V, rtol=1e-2, atol=1e-4), "out_V mismatch (f32)"
    assert jnp.allclose(out_A, ref_A, rtol=1e-2, atol=1e-4), "out_A mismatch (f32)"

    # --- same path with bf16 A (halves the dominant HBM traffic) ---
    out_Vb, out_Ab = make_node_pooling_forward(V, A, W, bias, output_node=K,
                                               a_dtype=jnp.bfloat16)
    jax.block_until_ready((out_Vb, out_Ab))
    assert jnp.allclose(out_Vb, ref_V, rtol=1e-2, atol=1e-4), "out_V mismatch (bf16 A)"
    assert jnp.allclose(out_Ab, ref_A, rtol=5e-2, atol=1e-2), "out_A mismatch (bf16 A)"

    # --- output_node = 1 path: A is returned untouched, never pooled ---
    W1 = jax.random.uniform(kW1, (1, F), minval=-bound, maxval=bound, dtype=jnp.float32)
    b1 = jax.random.uniform(kb1, (1,), minval=-bound, maxval=bound, dtype=jnp.float32)
    out_V1, out_A1 = make_node_pooling_forward(V, A, W1, b1, output_node=1)
    jax.block_until_ready((out_V1, out_A1))
    ref_V1, ref_A1 = _ref_forward(V, A, W1, b1, 1)
    assert out_V1.shape == (B, F)
    assert jnp.allclose(out_V1, ref_V1, rtol=1e-2, atol=1e-4), "out_V mismatch (K=1)"
    assert jnp.allclose(out_A1, ref_A1), "A must be returned unchanged (K=1)"

    print("KERNEL_OK")
</pallas_src>

<mosaic_0001>
module attributes {stable_mosaic.version = 11 : i64} {
  func.func @_pool_kernel(%arg0: i32, %arg1: memref<2x16x32xf32, #tpu.memory_space<vmem>>, %arg2: memref<2x16x32xf32, #tpu.memory_space<vmem>>, %arg3: memref<4x32xf32, #tpu.memory_space<vmem>>, %arg4: memref<2x4x32xf32, #tpu.memory_space<vmem>>, %arg5: memref<2x4x8xf32, #tpu.memory_space<vmem>>) attributes {dimension_semantics = [#tpu.dimension_semantics<parallel>], iteration_bounds = array<i64: 1>, scalar_prefetch = 0 : i64, scratch_operands = 0 : i64, tpu.core_type = #tpu.core_type<tc>, window_params = [{transform_indices = @transform_0, window_bounds = array<i64: 2, 16, 32>}, {transform_indices = @transform_1, window_bounds = array<i64: 2, 16, 32>}, {pipeline_mode = #tpu.pipeline_mode<synchronous>, transform_indices = @transform_2, window_bounds = array<i64: 4, 32>}, {transform_indices = @transform_3, window_bounds = array<i64: 2, 4, 32>}, {transform_indices = @transform_4, window_bounds = array<i64: 2, 4, 8>}]} {
    %c0 = arith.constant 0 : index
    %c0_0 = arith.constant 0 : index
    %0 = vector.load %arg3[%c0, %c0_0] : memref<4x32xf32, #tpu.memory_space<vmem>>, vector<4x32xf32>
    %c0_1 = arith.constant 0 : index
    %c0_2 = arith.constant 0 : index
    %c0_3 = arith.constant 0 : index
    %1 = vector.load %arg1[%c0_1, %c0_2, %c0_3] : memref<2x16x32xf32, #tpu.memory_space<vmem>>, vector<1x16x32xf32>
    %2 = vector.shape_cast %1 : vector<1x16x32xf32> to vector<16x32xf32>
    %c0_4 = arith.constant 0 : index
    %c0_5 = arith.constant 0 : index
    %c0_6 = arith.constant 0 : index
    %3 = vector.load %arg2[%c0_4, %c0_5, %c0_6] : memref<2x16x32xf32, #tpu.memory_space<vmem>>, vector<1x16x32xf32>
    %4 = vector.shape_cast %3 : vector<1x16x32xf32> to vector<16x32xf32>
    %cst = arith.constant dense<0.000000e+00> : vector<16x4xf32>
    %5 = tpu.matmul %2, %0, %cst {dimension_numbers = #tpu.dot_dimension_numbers<[1], [1], [0], [0], [0, 0, 1, 0], [], []>} : vector<16x32xf32>, vector<4x32xf32>, vector<16x4xf32> -> vector<16x4xf32>
    %cst_7 = arith.constant dense<0xFF800000> : vector<4xf32>
    %6 = vector.multi_reduction <maximumf>, %5, %cst_7 [0] : vector<16x4xf32> to vector<4xf32>
    %7 = vector.shape_cast %6 : vector<4xf32> to vector<1x4xf32>
    %8 = vector.broadcast %7 : vector<1x4xf32> to vector<16x4xf32>
    %9 = arith.subf %5, %8 : vector<16x4xf32>
    %10 = math.exp %9 : vector<16x4xf32>
    %cst_8 = arith.constant dense<0.000000e+00> : vector<4xf32>
    %11 = vector.multi_reduction <add>, %10, %cst_8 [0] : vector<16x4xf32> to vector<4xf32>
    %12 = vector.shape_cast %11 : vector<4xf32> to vector<1x4xf32>
    %13 = tpu.reciprocal %12 {approx = true} : vector<1x4xf32> -> vector<1x4xf32>
    %14 = vector.broadcast %13 : vector<1x4xf32> to vector<16x4xf32>
    %15 = arith.mulf %10, %14 : vector<16x4xf32>
    %cst_9 = arith.constant dense<0.000000e+00> : vector<4x32xf32>
    %16 = tpu.matmul %15, %2, %cst_9 {dimension_numbers = #tpu.dot_dimension_numbers<[0], [0], [1], [1], [0, 1, 1, 1], [], []>} : vector<16x4xf32>, vector<16x32xf32>, vector<4x32xf32> -> vector<4x32xf32>
    %c0_10 = arith.constant 0 : index
    %c0_11 = arith.constant 0 : index
    %c0_12 = arith.constant 0 : index
    %17 = vector.load %arg4[%c0_10, %c0_11, %c0_12] : memref<2x4x32xf32, #tpu.memory_space<vmem>>, vector<1x4x32xf32>
    %18 = vector.shape_cast %17 : vector<1x4x32xf32> to vector<4x32xf32>
    %19 = vector.shape_cast %16 : vector<4x32xf32> to vector<1x4x32xf32>
    tpu.vector_store %arg4[%c0_10, %c0_11, %c0_12], %19 {strides = array<i32>} : memref<2x4x32xf32, #tpu.memory_space<vmem>>, vector<1x4x32xf32>,
    %cst_13 = arith.constant dense<0.000000e+00> : vector<4x32xf32>
    %20 = tpu.matmul %15, %4, %cst_13 {dimension_numbers = #tpu.dot_dimension_numbers<[0], [0], [1], [1], [0, 1, 1, 1], [], []>} : vector<16x4xf32>, vector<16x32xf32>, vector<4x32xf32> -> vector<4x32xf32>
    %21 = vector.extract_strided_slice %20 {offsets = [0, 0], sizes = [4, 16], strides = [1, 1]} : vector<4x32xf32> to vector<4x16xf32>
    %cst_14 = arith.constant dense<0.000000e+00> : vector<4x4xf32>
    %22 = tpu.matmul %21, %15, %cst_14 {dimension_numbers = #tpu.dot_dimension_numbers<[1], [0], [0], [1], [0, 0, 1, 1], [], []>} : vector<4x16xf32>, vector<16x4xf32>, vector<4x4xf32> -> vector<4x4xf32>
    %23 = vector.extract_strided_slice %20 {offsets = [0, 16], sizes = [4, 16], strides = [1, 1]} : vector<4x32xf32> to vector<4x16xf32>
    %cst_15 = arith.constant dense<0.000000e+00> : vector<4x4xf32>
    %24 = tpu.matmul %23, %15, %cst_15 {dimension_numbers = #tpu.dot_dimension_numbers<[1], [0], [0], [1], [0, 0, 1, 1], [], []>} : vector<4x16xf32>, vector<16x4xf32>, vector<4x4xf32> -> vector<4x4xf32>
    %25 = tpu.concatenate %22, %24 in 1 : vector<4x4xf32>, vector<4x4xf32> -> vector<4x8xf32>
    %c0_16 = arith.constant 0 : index
    %c0_17 = arith.constant 0 : index
    %c0_18 = arith.constant 0 : index
    %26 = vector.load %arg5[%c0_16, %c0_17, %c0_18] : memref<2x4x8xf32, #tpu.memory_space<vmem>>, vector<1x4x8xf32>
    %27 = vector.shape_cast %26 : vector<1x4x8xf32> to vector<4x8xf32>
    %28 = vector.shape_cast %25 : vector<4x8xf32> to vector<1x4x8xf32>
    tpu.vector_store %arg5[%c0_16, %c0_17, %c0_18], %28 {strides = array<i32>} : memref<2x4x8xf32, #tpu.memory_space<vmem>>, vector<1x4x8xf32>,
    %c1 = arith.constant 1 : index
    %c0_19 = arith.constant 0 : index
    %c0_20 = arith.constant 0 : index
    %29 = vector.load %arg1[%c1, %c0_19, %c0_20] : memref<2x16x32xf32, #tpu.memory_space<vmem>>, vector<1x16x32xf32>
    %30 = vector.shape_cast %29 : vector<1x16x32xf32> to vector<16x32xf32>
    %c1_21 = arith.constant 1 : index
    %c0_22 = arith.constant 0 : index
    %c0_23 = arith.constant 0 : index
    %31 = vector.load %arg2[%c1_21, %c0_22, %c0_23] : memref<2x16x32xf32, #tpu.memory_space<vmem>>, vector<1x16x32xf32>
    %32 = vector.shape_cast %31 : vector<1x16x32xf32> to vector<16x32xf32>
    %cst_24 = arith.constant dense<0.000000e+00> : vector<16x4xf32>
    %33 = tpu.matmul %30, %0, %cst_24 {dimension_numbers = #tpu.dot_dimension_numbers<[1], [1], [0], [0], [0, 0, 1, 0], [], []>} : vector<16x32xf32>, vector<4x32xf32>, vector<16x4xf32> -> vector<16x4xf32>
    %cst_25 = arith.constant dense<0xFF800000> : vector<4xf32>
    %34 = vector.multi_reduction <maximumf>, %33, %cst_25 [0] : vector<16x4xf32> to vector<4xf32>
    %35 = vector.shape_cast %34 : vector<4xf32> to vector<1x4xf32>
    %36 = vector.broadcast %35 : vector<1x4xf32> to vector<16x4xf32>
    %37 = arith.subf %33, %36 : vector<16x4xf32>
    %38 = math.exp %37 : vector<16x4xf32>
    %cst_26 = arith.constant dense<0.000000e+00> : vector<4xf32>
    %39 = vector.multi_reduction <add>, %38, %cst_26 [0] : vector<16x4xf32> to vector<4xf32>
    %40 = vector.shape_cast %39 : vector<4xf32> to vector<1x4xf32>
    %41 = tpu.reciprocal %40 {approx = true} : vector<1x4xf32> -> vector<1x4xf32>
    %42 = vector.broadcast %41 : vector<1x4xf32> to vector<16x4xf32>
    %43 = arith.mulf %38, %42 : vector<16x4xf32>
    %cst_27 = arith.constant dense<0.000000e+00> : vector<4x32xf32>
    %44 = tpu.matmul %43, %30, %cst_27 {dimension_numbers = #tpu.dot_dimension_numbers<[0], [0], [1], [1], [0, 1, 1, 1], [], []>} : vector<16x4xf32>, vector<16x32xf32>, vector<4x32xf32> -> vector<4x32xf32>
    %c1_28 = arith.constant 1 : index
    %c0_29 = arith.constant 0 : index
    %c0_30 = arith.constant 0 : index
    %45 = vector.load %arg4[%c1_28, %c0_29, %c0_30] : memref<2x4x32xf32, #tpu.memory_space<vmem>>, vector<1x4x32xf32>
    %46 = vector.shape_cast %45 : vector<1x4x32xf32> to vector<4x32xf32>
    %47 = vector.shape_cast %44 : vector<4x32xf32> to vector<1x4x32xf32>
    tpu.vector_store %arg4[%c1_28, %c0_29, %c0_30], %47 {strides = array<i32>} : memref<2x4x32xf32, #tpu.memory_space<vmem>>, vector<1x4x32xf32>,
    %cst_31 = arith.constant dense<0.000000e+00> : vector<4x32xf32>
    %48 = tpu.matmul %43, %32, %cst_31 {dimension_numbers = #tpu.dot_dimension_numbers<[0], [0], [1], [1], [0, 1, 1, 1], [], []>} : vector<16x4xf32>, vector<16x32xf32>, vector<4x32xf32> -> vector<4x32xf32>
    %49 = vector.extract_strided_slice %48 {offsets = [0, 0], sizes = [4, 16], strides = [1, 1]} : vector<4x32xf32> to vector<4x16xf32>
    %cst_32 = arith.constant dense<0.000000e+00> : vector<4x4xf32>
    %50 = tpu.matmul %49, %43, %cst_32 {dimension_numbers = #tpu.dot_dimension_numbers<[1], [0], [0], [1], [0, 0, 1, 1], [], []>} : vector<4x16xf32>, vector<16x4xf32>, vector<4x4xf32> -> vector<4x4xf32>
    %51 = vector.extract_strided_slice %48 {offsets = [0, 16], sizes = [4, 16], strides = [1, 1]} : vector<4x32xf32> to vector<4x16xf32>
    %cst_33 = arith.constant dense<0.000000e+00> : vector<4x4xf32>
    %52 = tpu.matmul %51, %43, %cst_33 {dimension_numbers = #tpu.dot_dimension_numbers<[1], [0], [0], [1], [0, 0, 1, 1], [], []>} : vector<4x16xf32>, vector<16x4xf32>, vector<4x4xf32> -> vector<4x4xf32>
    %53 = tpu.concatenate %50, %52 in 1 : vector<4x4xf32>, vector<4x4xf32> -> vector<4x8xf32>
    %c1_34 = arith.constant 1 : index
    %c0_35 = arith.constant 0 : index
    %c0_36 = arith.constant 0 : index
    %54 = vector.load %arg5[%c1_34, %c0_35, %c0_36] : memref<2x4x8xf32, #tpu.memory_space<vmem>>, vector<1x4x8xf32>
    %55 = vector.shape_cast %54 : vector<1x4x8xf32> to vector<4x8xf32>
    %56 = vector.shape_cast %53 : vector<4x8xf32> to vector<1x4x8xf32>
    tpu.vector_store %arg5[%c1_34, %c0_35, %c0_36], %56 {strides = array<i32>} : memref<2x4x8xf32, #tpu.memory_space<vmem>>, vector<1x4x8xf32>,
    return
  }
  func.func @transform_0(%arg0: i32) -> (i32, i32, i32) {
    %c0_i32 = arith.constant 0 : i32
    %c0_i32_0 = arith.constant 0 : i32
    %c0_i32_1 = arith.constant 0 : i32
    return %arg0, %c0_i32, %c0_i32_0 : i32, i32, i32
  }
  func.func @transform_1(%arg0: i32) -> (i32, i32, i32) {
    %c0_i32 = arith.constant 0 : i32
    %c0_i32_0 = arith.constant 0 : i32
    %c0_i32_1 = arith.constant 0 : i32
    return %arg0, %c0_i32, %c0_i32_0 : i32, i32, i32
  }
  func.func @transform_2(%arg0: i32) -> (i32, i32) {
    %c0_i32 = arith.constant 0 : i32
    %c0_i32_0 = arith.constant 0 : i32
    %c0_i32_1 = arith.constant 0 : i32
    return %c0_i32, %c0_i32_0 : i32, i32
  }
  func.func @transform_3(%arg0: i32) -> (i32, i32, i32) {
    %c0_i32 = arith.constant 0 : i32
    %c0_i32_0 = arith.constant 0 : i32
    %c0_i32_1 = arith.constant 0 : i32
    return %arg0, %c0_i32, %c0_i32_0 : i32, i32, i32
  }
  func.func @transform_4(%arg0: i32) -> (i32, i32, i32) {
    %c0_i32 = arith.constant 0 : i32
    %c0_i32_0 = arith.constant 0 : i32
    %c0_i32_1 = arith.constant 0 : i32
    return %arg0, %c0_i32, %c0_i32_0 : i32, i32, i32
  }
}

</mosaic_0001>

<llo_original>
// kernel: tpu_custom_call.1
$region0: #{tpu_custom_call.1}
  #allocation0 [shape = 'u32[]', space=smem, size = 0x4, offset = 0x4, fixed_abs, tag = 'smem constant byte address 0x4 - core index']
  #allocation1 [shape = 'u32[144,128]{1,0:T(1,128)}', space=vmem, size = 0x12000, scoped, tag = 'internal scratch']
  %s0 = inlined_call_operand.hbm [shape: f32[2,16,32], index: 0, kind: input, shape index: {}]
  %s1 = inlined_call_operand.hbm [shape: f32[2,16,32], index: 1, kind: input, shape index: {}]
  %s2 = inlined_call_operand.vmem [shape: f32[4,32], index: 2, kind: input, shape index: {}]
  %s3 = inlined_call_operand.hbm [shape: f32[2,4,32], index: 3, kind: output, shape index: {0}]
  %s4 = inlined_call_operand.hbm [shape: f32[2,4,8], index: 4, kind: output, shape index: {1}]
  %5 = xla_tuple %s3, %s4
  %s6 = sld [smem:[#allocation0]]
  $region38: #{tpu_custom_call.1} parent=0
    _
  %s8 = ssub.s32 1, %s6
  %s9 = scalar_select 0, %s8, %s6
  $region1: #{tpu_custom_call.1} parent=0
    #allocation2 [shape = 'u8[16384]{0}', space=vmem, size = 0x4000, scoped, tag = 'input window, operand 0, single buffered']
    #allocation3 [shape = 's32[1]{0}', space=sflag, size = 0x4, scoped, tag = 'scoped memory for tpu_custom_call.1']
    #allocation4 [shape = 's32[1]{0}', space=sflag, size = 0x4, scoped, tag = 'scoped memory for tpu_custom_call.1']
    #allocation5 [shape = 'u8[16384]{0}', space=vmem, size = 0x4000, scoped, tag = 'input window, operand 1, single buffered']
    #allocation6 [shape = 's32[1]{0}', space=sflag, size = 0x4, scoped, tag = 'scoped memory for tpu_custom_call.1']
    #allocation7 [shape = 'u8[4096]{0}', space=vmem, size = 0x1000, scoped, tag = 'output window, operand 0, single buffered']
    #allocation8 [shape = 'u8[4096]{0}', space=vmem, size = 0x1000, scoped, tag = 'output window, operand 1, single buffered']
    #allocation9 [shape = 's32[1]{0}', space=sflag, size = 0x4, scoped, tag = 'scoped memory for tpu_custom_call.1']
    %10 = vsyncpa [#allocation3], 0
    %11 = vsyncpa [#allocation6], 0
    %12 = vsyncpa [#allocation4], 0
    %13 = vsyncpa [#allocation9], 0
    // Predicated region
    $region2: #{tpu_custom_call.1} parent=1 // pred_check
      _
    $region3: #{tpu_custom_call.1} parent=1 // pred_check_branch
      %15 = sbr.rel (0) target = $region5
    $region4: #{tpu_custom_call.1} parent=1 // pred_region
      %s17 = ssub.s32 512, 512
      %18 = vsyncadd [#allocation3], %s17
      %s19 = sshll.u32 [#allocation2], 4
      %s20 = int_to_ptr.vmem [resolvable:$true] %s19
      %25 = dma.hbm_to_vmem [thread:$0]  %s0, 512, %s20, [#allocation3], 128, 128, 8
    $region5: #{tpu_custom_call.1} parent=1 // pred_fallthru
      _
    // Predicated region
    $region6: #{tpu_custom_call.1} parent=1 // pred_check
      _
    $region7: #{tpu_custom_call.1} parent=1 // pred_check_branch
      %27 = sbr.rel (0) target = $region9
    $region8: #{tpu_custom_call.1} parent=1 // pred_region
      %s29 = ssub.s32 512, 512
      %30 = vsyncadd [#allocation6], %s29
      %s31 = sshll.u32 [#allocation5], 4
      %s32 = int_to_ptr.vmem [resolvable:$true] %s31
      %37 = dma.hbm_to_vmem [thread:$0]  %s1, 512, %s32, [#allocation6], 128, 128, 8
    $region9: #{tpu_custom_call.1} parent=1 // pred_fallthru
      _
    // Predicated region
    $region10: #{tpu_custom_call.1} parent=1 // pred_check
      _
    $region11: #{tpu_custom_call.1} parent=1 // pred_check_branch
      %39 = sbr.rel (0) target = $region13
    $region12: #{tpu_custom_call.1} parent=1 // pred_region
      _
    $region13: #{tpu_custom_call.1} parent=1 // pred_fallthru
      _
    // Predicated region
    $region14: #{tpu_custom_call.1} parent=1 // pred_check
      _
    $region15: #{tpu_custom_call.1} parent=1 // pred_check_branch
      %41 = sbr.rel (0) target = $region17
    $region16: #{tpu_custom_call.1} parent=1 // pred_region
      %42 = dma.done [#allocation3], 512
    $region17: #{tpu_custom_call.1} parent=1 // pred_fallthru
      _
    // Predicated region
    $region18: #{tpu_custom_call.1} parent=1 // pred_check
      _
    $region19: #{tpu_custom_call.1} parent=1 // pred_check_branch
      %44 = sbr.rel (0) target = $region21
    $region20: #{tpu_custom_call.1} parent=1 // pred_region
      %45 = dma.done [#allocation6], 512
    $region21: #{tpu_custom_call.1} parent=1 // pred_fallthru
      _
    %v46 = vld [vmem:[%s2] sm:$0xf]
    %v47 = vld [vmem:[#allocation2] sm:$0xff]
    %v48 = vld [vmem:[#allocation2 + $0x8] sm:$0xff]
    %v49 = vld [vmem:[#allocation5] sm:$0xff]
    %v50 = vld [vmem:[#allocation5 + $0x8] sm:$0xff]
    %vm51 = vcmask 261120
    %v53 = vsel %vm51, %v47, 0
    %v56 = vsel %vm51, %v48, 0
    %v59 = vsel %vm51, %v46, 0
    %61 = vmatprep.subr.mxu0 0.0
    %62 = vmatpush1.xpose.msra.mxu0 %v59
    %63 = vmatprep.subr.mxu0 0.0
    %64 = vmatpush1.xpose.msra.mxu0 0.0
    %65 = vmatprep.subr.mxu0 0.0
    %66 = vmatpush1.xpose.msra.mxu0 0.0
    %67 = vmatprep.subr.mxu0 0.0
    %68 = vmatpush1.xpose.msra.mxu0 0.0
    %69 = vmatprep.subr.mxu0 0.0
    %70 = vmatpush1.xpose.msra.mxu0 0.0
    %71 = vmatprep.subr.mxu0 0.0
    %72 = vmatpush1.xpose.msra.mxu0 0.0
    %73 = vmatprep.subr.mxu0 0.0
    %74 = vmatpush1.xpose.msra.mxu0 0.0
    %75 = vmatprep.subr.mxu0 0.0
    %76 = vmatpush1.xpose.msra.mxu0 0.0
    %77 = vmatprep.subr.mxu0 0.0
    %78 = vmatpush1.xpose.msra.mxu0 0.0
    %79 = vmatprep.subr.mxu0 0.0
    %80 = vmatpush1.xpose.msra.mxu0 0.0
    %81 = vmatprep.subr.mxu0 0.0
    %82 = vmatpush1.xpose.msra.mxu0 0.0
    %83 = vmatprep.subr.mxu0 0.0
    %84 = vmatpush1.xpose.msra.mxu0 0.0
    %85 = vmatprep.subr.mxu0 0.0
    %86 = vmatpush1.xpose.msra.mxu0 0.0
    %87 = vmatprep.subr.mxu0 0.0
    %88 = vmatpush1.xpose.msra.mxu0 0.0
    %89 = vmatprep.subr.mxu0 0.0
    %90 = vmatpush1.xpose.msra.mxu0 0.0
    %91 = vmatprep.subr.mxu0 0.0
    %92 = vmatpush1.xpose.msra.mxu0 0.0
    %93 = vmatprep.subr.mxu0 0.0
    %94 = vmatpush1.xpose.msra.mxu0 0.0
    %95 = vmatprep.subr.mxu0 0.0
    %96 = vmatpush1.xpose.msra.mxu0 0.0
    %97 = vmatprep.subr.mxu0 0.0
    %98 = vmatpush1.xpose.msra.mxu0 0.0
    %99 = vmatprep.subr.mxu0 0.0
    %100 = vmatpush1.xpose.msra.mxu0 0.0
    %101 = vmatprep.subr.mxu0 0.0
    %102 = vmatpush1.xpose.msra.mxu0 0.0
    %103 = vmatprep.subr.mxu0 0.0
    %104 = vmatpush1.xpose.msra.mxu0 0.0
    %105 = vmatprep.subr.mxu0 0.0
    %106 = vmatpush1.xpose.msra.mxu0 0.0
    %107 = vmatprep.subr.mxu0 0.0
    %108 = vmatpush1.xpose.msra.mxu0 0.0
    %109 = vmatprep.subr.mxu0 0.0
    %110 = vmatpush1.xpose.msra.mxu0 0.0
    %111 = vmatprep.subr.mxu0 0.0
    %112 = vmatpush1.xpose.msra.mxu0 0.0
    %113 = vmatprep.subr.mxu0 0.0
    %114 = vmatpush1.xpose.msra.mxu0 0.0
    %115 = vmatprep.subr.mxu0 0.0
    %116 = vmatpush1.xpose.msra.mxu0 0.0
    %117 = vmatprep.subr.mxu0 0.0
    %118 = vmatpush1.xpose.msra.mxu0 0.0
    %119 = vmatprep.subr.mxu0 0.0
    %120 = vmatpush1.xpose.msra.mxu0 0.0
    %121 = vmatprep.subr.mxu0 0.0
    %122 = vmatpush1.xpose.msra.mxu0 0.0
    %123 = vmatprep.subr.mxu0 0.0
    %124 = vmatpush1.xpose.msra.mxu0 0.0
    %125 = vmatprep.mubr.f32.mxu0 0.0
    %126 = vmatmul.mubr.f32.gmra.mrb[0].mxu0 %v53
    %v127 = vpop.f32.mrb[0].mxu0
    %v128 = vadd.f32 0.0, %v127
    %v129 = vpop.f32.mrb[0].mxu0
    %130 = vmatprep.mubr.f32.mxu0 0.0
    %131 = vmatmul.mubr.f32.gmra.mrb[0].mxu0 %v56
    %v132 = vpop.f32.mrb[0].mxu0
    %v133 = vadd.f32 0.0, %v132
    %v134 = vpop.f32.mrb[0].mxu0
    %135 = vdwg.mxu0
    %vm136 = vcmask 31744
    %v137 = vsel %vm136, %v128, -inf
    %v138 = vsel %vm136, %v133, -inf
    %v139 = vmax.f32 %v137, %v138
    %v140 = vrot.slane %v139, 4
    %v141 = vmax.f32 %v139, %v140
    %v142 = vrot.slane %v141, 2
    %v143 = vmax.f32 %v141, %v142
    %v144 = vrot.slane %v143, 1
    %v145 = vmax.f32 %v143, %v144
    %v146 = vsub.f32 %v128, %v145
    %v147 = vsub.f32 %v133, %v145
    %v148 = vmul.f32 %v146, 1.442695
    %v149 = vpow.pop %v148
    %v150 = vmul.f32 %v147, 1.442695
    %v151 = vpow.pop %v150
    %v152 = vsel %vm136, %v149, 0.0
    %v153 = vsel %vm136, %v151, 0.0
    %v154 = vadd.f32 %v152, %v153
    %v155 = vrot.slane %v154, 4
    %v156 = vadd.f32 %v154, %v155
    %v157 = vrot.slane %v156, 2
    %v158 = vadd.f32 %v156, %v157
    %v159 = vrot.slane %v158, 1
    %v160 = vadd.f32 %v158, %v159
    %v161 = vrcp.pop %v160
    %v162 = vmul.f32 %v149, %v161
    %v163 = vmul.f32 %v151, %v161
    %164 = vxpose.xlu0.b32.start [1/16] %v162, 128
    %165 = vxpose.xlu0.b32.cont [2/16] %v163, 128
    %166 = vxpose.xlu0.b32.cont [3/16] 0.0, 128
    %167 = vxpose.xlu0.b32.cont [4/16] 0.0, 128
    %168 = vxpose.xlu0.b32.cont [5/16] 0.0, 128
    %169 = vxpose.xlu0.b32.cont [6/16] 0.0, 128
    %170 = vxpose.xlu0.b32.cont [7/16] 0.0, 128
    %171 = vxpose.xlu0.b32.cont [8/16] 0.0, 128
    %172 = vxpose.xlu0.b32.cont [9/16] 0.0, 128
    %173 = vxpose.xlu0.b32.cont [10/16] 0.0, 128
    %174 = vxpose.xlu0.b32.cont [11/16] 0.0, 128
    %175 = vxpose.xlu0.b32.cont [12/16] 0.0, 128
    %176 = vxpose.xlu0.b32.cont [13/16] 0.0, 128
    %177 = vxpose.xlu0.b32.cont [14/16] 0.0, 128
    %178 = vxpose.xlu0.b32.cont [15/16] 0.0, 128
    %179 = vxpose.xlu0.b32.end [16/16] 0.0, 128
    %v180 = vpop.trf.xlu0
    %v181 = vpop.trf.xlu0
    %v182 = vpop.trf.xlu0
    %v183 = vpop.trf.xlu0
    %v184 = vpop.trf.xlu0
    %v185 = vpop.trf.xlu0
    %v186 = vpop.trf.xlu0
    %v187 = vpop.trf.xlu0
    %v188 = vpop.trf.xlu0
    %v189 = vpop.trf.xlu0
    %v190 = vpop.trf.xlu0
    %v191 = vpop.trf.xlu0
    %v192 = vpop.trf.xlu0
    %v193 = vpop.trf.xlu0
    %v194 = vpop.trf.xlu0
    %v195 = vpop.trf.xlu0
    %vm196 = vcmask 130048
    %v198 = vsel %vm196, %v180, 0
    %200 = vmatprep.subr.mxu0 0.0
    %201 = vmatpush1.msra.mxu0 %v47
    %202 = vmatprep.subr.mxu0 0.0
    %203 = vmatpush1.msra.mxu0 %v48
    %204 = vmatprep.subr.mxu0 0.0
    %205 = vmatpush1.msra.mxu0 0.0
    %206 = vmatprep.subr.mxu0 0.0
    %207 = vmatpush1.msra.mxu0 0.0
    %208 = vmatprep.subr.mxu0 0.0
    %209 = vmatpush1.msra.mxu0 0.0
    %210 = vmatprep.subr.mxu0 0.0
    %211 = vmatpush1.msra.mxu0 0.0
    %212 = vmatprep.subr.mxu0 0.0
    %213 = vmatpush1.msra.mxu0 0.0
    %214 = vmatprep.subr.mxu0 0.0
    %215 = vmatpush1.msra.mxu0 0.0
    %216 = vmatprep.subr.mxu0 0.0
    %217 = vmatpush1.msra.mxu0 0.0
    %218 = vmatprep.subr.mxu0 0.0
    %219 = vmatpush1.msra.mxu0 0.0
    %220 = vmatprep.subr.mxu0 0.0
    %221 = vmatpush1.msra.mxu0 0.0
    %222 = vmatprep.subr.mxu0 0.0
    %223 = vmatpush1.msra.mxu0 0.0
    %224 = vmatprep.subr.mxu0 0.0
    %225 = vmatpush1.msra.mxu0 0.0
    %226 = vmatprep.subr.mxu0 0.0
    %227 = vmatpush1.msra.mxu0 0.0
    %228 = vmatprep.subr.mxu0 0.0
    %229 = vmatpush1.msra.mxu0 0.0
    %230 = vmatprep.subr.mxu0 0.0
    %231 = vmatpush1.msra.mxu0 0.0
    %232 = vmatprep.subr.mxu0 0.0
    %233 = vmatpush1.msra.mxu0 0.0
    %234 = vmatprep.subr.mxu0 0.0
    %235 = vmatpush1.msra.mxu0 0.0
    %236 = vmatprep.subr.mxu0 0.0
    %237 = vmatpush1.msra.mxu0 0.0
    %238 = vmatprep.subr.mxu0 0.0
    %239 = vmatpush1.msra.mxu0 0.0
    %240 = vmatprep.subr.mxu0 0.0
    %241 = vmatpush1.msra.mxu0 0.0
    %242 = vmatprep.subr.mxu0 0.0
    %243 = vmatpush1.msra.mxu0 0.0
    %244 = vmatprep.subr.mxu0 0.0
    %245 = vmatpush1.msra.mxu0 0.0
    %246 = vmatprep.subr.mxu0 0.0
    %247 = vmatpush1.msra.mxu0 0.0
    %248 = vmatprep.subr.mxu0 0.0
    %249 = vmatpush1.msra.mxu0 0.0
    %250 = vmatprep.subr.mxu0 0.0
    %251 = vmatpush1.msra.mxu0 0.0
    %252 = vmatprep.subr.mxu0 0.0
    %253 = vmatpush1.msra.mxu0 0.0
    %254 = vmatprep.subr.mxu0 0.0
    %255 = vmatpush1.msra.mxu0 0.0
    %256 = vmatprep.subr.mxu0 0.0
    %257 = vmatpush1.msra.mxu0 0.0
    %258 = vmatprep.subr.mxu0 0.0
    %259 = vmatpush1.msra.mxu0 0.0
    %260 = vmatprep.subr.mxu0 0.0
    %261 = vmatpush1.msra.mxu0 0.0
    %262 = vmatprep.subr.mxu0 0.0
    %263 = vmatpush1.msra.mxu0 0.0
    %264 = vmatprep.mubr.f32.mxu0 0.0
    %265 = vmatmul.mubr.f32.gmra.mrb[0].mxu0 %v198
    %v266 = vpop.f32.mrb[0].mxu0
    %v267 = vadd.f32 0.0, %v266
    %v268 = vpop.f32.mrb[0].mxu0
    %269 = vdwg.mxu0
    %vm270 = vcmask 257024
    %271 = vst.msk [vmem:[#allocation7] sm:$0xf] %vm270, %v267
    %272 = vmatprep.subr.mxu0 0.0
    %273 = vmatpush1.msra.mxu0 %v49
    %274 = vmatprep.subr.mxu0 0.0
    %275 = vmatpush1.msra.mxu0 %v50
    %276 = vmatprep.subr.mxu0 0.0
    %277 = vmatpush1.msra.mxu0 0.0
    %278 = vmatprep.subr.mxu0 0.0
    %279 = vmatpush1.msra.mxu0 0.0
    %280 = vmatprep.subr.mxu0 0.0
    %281 = vmatpush1.msra.mxu0 0.0
    %282 = vmatprep.subr.mxu0 0.0
    %283 = vmatpush1.msra.mxu0 0.0
    %284 = vmatprep.subr.mxu0 0.0
    %285 = vmatpush1.msra.mxu0 0.0
    %286 = vmatprep.subr.mxu0 0.0
    %287 = vmatpush1.msra.mxu0 0.0
    %288 = vmatprep.subr.mxu0 0.0
    %289 = vmatpush1.msra.mxu0 0.0
    %290 = vmatprep.subr.mxu0 0.0
    %291 = vmatpush1.msra.mxu0 0.0
    %292 = vmatprep.subr.mxu0 0.0
    %293 = vmatpush1.msra.mxu0 0.0
    %294 = vmatprep.subr.mxu0 0.0
    %295 = vmatpush1.msra.mxu0 0.0
    %296 = vmatprep.subr.mxu0 0.0
    %297 = vmatpush1.msra.mxu0 0.0
    %298 = vmatprep.subr.mxu0 0.0
    %299 = vmatpush1.msra.mxu0 0.0
    %300 = vmatprep.subr.mxu0 0.0
    %301 = vmatpush1.msra.mxu0 0.0
    %302 = vmatprep.subr.mxu0 0.0
    %303 = vmatpush1.msra.mxu0 0.0
    %304 = vmatprep.subr.mxu0 0.0
    %305 = vmatpush1.msra.mxu0 0.0
    %306 = vmatprep.subr.mxu0 0.0
    %307 = vmatpush1.msra.mxu0 0.0
    %308 = vmatprep.subr.mxu0 0.0
    %309 = vmatpush1.msra.mxu0 0.0
    %310 = vmatprep.subr.mxu0 0.0
    %311 = vmatpush1.msra.mxu0 0.0
    %312 = vmatprep.subr.mxu0 0.0
    %313 = vmatpush1.msra.mxu0 0.0
    %314 = vmatprep.subr.mxu0 0.0
    %315 = vmatpush1.msra.mxu0 0.0
    %316 = vmatprep.subr.mxu0 0.0
    %317 = vmatpush1.msra.mxu0 0.0
    %318 = vmatprep.subr.mxu0 0.0
    %319 = vmatpush1.msra.mxu0 0.0
    %320 = vmatprep.subr.mxu0 0.0
    %321 = vmatpush1.msra.mxu0 0.0
    %322 = vmatprep.subr.mxu0 0.0
    %323 = vmatpush1.msra.mxu0 0.0
    %324 = vmatprep.subr.mxu0 0.0
    %325 = vmatpush1.msra.mxu0 0.0
    %326 = vmatprep.subr.mxu0 0.0
    %327 = vmatpush1.msra.mxu0 0.0
    %328 = vmatprep.subr.mxu0 0.0
    %329 = vmatpush1.msra.mxu0 0.0
    %330 = vmatprep.subr.mxu0 0.0
    %331 = vmatpush1.msra.mxu0 0.0
    %332 = vmatprep.subr.mxu0 0.0
    %333 = vmatpush1.msra.mxu0 0.0
    %334 = vmatprep.subr.mxu0 0.0
    %335 = vmatpush1.msra.mxu0 0.0
    %336 = vmatprep.mubr.f32.mxu0 0.0
    %337 = vmatmul.mubr.f32.gmra.mrb[0].mxu0 %v198
    %v338 = vpop.f32.mrb[0].mxu0
    %v339 = vadd.f32 0.0, %v338
    %v340 = vpop.f32.mrb[0].mxu0
    %341 = vdwg.mxu0
    %v343 = vsel %vm196, %v339, 0
    %345 = vmatprep.subr.mxu0 0.0
    %346 = vmatpush1.msra.mxu0 %v162
    %347 = vmatprep.subr.mxu0 0.0
    %348 = vmatpush1.msra.mxu0 %v163
    %349 = vmatprep.subr.mxu0 0.0
    %350 = vmatpush1.msra.mxu0 0.0
    %351 = vmatprep.subr.mxu0 0.0
    %352 = vmatpush1.msra.mxu0 0.0
    %353 = vmatprep.subr.mxu0 0.0
    %354 = vmatpush1.msra.mxu0 0.0
    %355 = vmatprep.subr.mxu0 0.0
    %356 = vmatpush1.msra.mxu0 0.0
    %357 = vmatprep.subr.mxu0 0.0
    %358 = vmatpush1.msra.mxu0 0.0
    %359 = vmatprep.subr.mxu0 0.0
    %360 = vmatpush1.msra.mxu0 0.0
    %361 = vmatprep.subr.mxu0 0.0
    %362 = vmatpush1.msra.mxu0 0.0
    %363 = vmatprep.subr.mxu0 0.0
    %364 = vmatpush1.msra.mxu0 0.0
    %365 = vmatprep.subr.mxu0 0.0
    %366 = vmatpush1.msra.mxu0 0.0
    %367 = vmatprep.subr.mxu0 0.0
    %368 = vmatpush1.msra.mxu0 0.0
    %369 = vmatprep.subr.mxu0 0.0
    %370 = vmatpush1.msra.mxu0 0.0
    %371 = vmatprep.subr.mxu0 0.0
    %372 = vmatpush1.msra.mxu0 0.0
    %373 = vmatprep.subr.mxu0 0.0
    %374 = vmatpush1.msra.mxu0 0.0
    %375 = vmatprep.subr.mxu0 0.0
    %376 = vmatpush1.msra.mxu0 0.0
    %377 = vmatprep.subr.mxu0 0.0
    %378 = vmatpush1.msra.mxu0 0.0
    %379 = vmatprep.subr.mxu0 0.0
    %380 = vmatpush1.msra.mxu0 0.0
    %381 = vmatprep.subr.mxu0 0.0
    %382 = vmatpush1.msra.mxu0 0.0
    %383 = vmatprep.subr.mxu0 0.0
    %384 = vmatpush1.msra.mxu0 0.0
    %385 = vmatprep.subr.mxu0 0.0
    %386 = vmatpush1.msra.mxu0 0.0
    %387 = vmatprep.subr.mxu0 0.0
    %388 = vmatpush1.msra.mxu0 0.0
    %389 = vmatprep.subr.mxu0 0.0
    %390 = vmatpush1.msra.mxu0 0.0
    %391 = vmatprep.subr.mxu0 0.0
    %392 = vmatpush1.msra.mxu0 0.0
    %393 = vmatprep.subr.mxu0 0.0
    %394 = vmatpush1.msra.mxu0 0.0
    %395 = vmatprep.subr.mxu0 0.0
    %396 = vmatpush1.msra.mxu0 0.0
    %397 = vmatprep.subr.mxu0 0.0
    %398 = vmatpush1.msra.mxu0 0.0
    %399 = vmatprep.subr.mxu0 0.0
    %400 = vmatpush1.msra.mxu0 0.0
    %401 = vmatprep.subr.mxu0 0.0
    %402 = vmatpush1.msra.mxu0 0.0
    %403 = vmatprep.subr.mxu0 0.0
    %404 = vmatpush1.msra.mxu0 0.0
    %405 = vmatprep.subr.mxu0 0.0
    %406 = vmatpush1.msra.mxu0 0.0
    %407 = vmatprep.subr.mxu0 0.0
    %408 = vmatpush1.msra.mxu0 0.0
    %409 = vmatprep.mubr.f32.mxu0 0.0
    %410 = vmatmul.mubr.f32.gmra.mrb[0].mxu0 %v343
    %v411 = vpop.f32.mrb[0].mxu0
    %v412 = vadd.f32 0.0, %v411
    %v413 = vpop.f32.mrb[0].mxu0
    %414 = vdwg.mxu0
    %415 = vrot.lane.b32.xlu0 %v339, 112
    %v416 = vpop.permute.xlu0 %415
    %v417 = vsel %vm196, %v416, 0
    %419 = vmatprep.subr.mxu0 0.0
    %420 = vmatpush1.msra.mxu0 %v162
    %421 = vmatprep.subr.mxu0 0.0
    %422 = vmatpush1.msra.mxu0 %v163
    %423 = vmatprep.subr.mxu0 0.0
    %424 = vmatpush1.msra.mxu0 0.0
    %425 = vmatprep.subr.mxu0 0.0
    %426 = vmatpush1.msra.mxu0 0.0
    %427 = vmatprep.subr.mxu0 0.0
    %428 = vmatpush1.msra.mxu0 0.0
    %429 = vmatprep.subr.mxu0 0.0
    %430 = vmatpush1.msra.mxu0 0.0
    %431 = vmatprep.subr.mxu0 0.0
    %432 = vmatpush1.msra.mxu0 0.0
    %433 = vmatprep.subr.mxu0 0.0
    %434 = vmatpush1.msra.mxu0 0.0
    %435 = vmatprep.subr.mxu0 0.0
    %436 = vmatpush1.msra.mxu0 0.0
    %437 = vmatprep.subr.mxu0 0.0
    %438 = vmatpush1.msra.mxu0 0.0
    %439 = vmatprep.subr.mxu0 0.0
    %440 = vmatpush1.msra.mxu0 0.0
    %441 = vmatprep.subr.mxu0 0.0
    %442 = vmatpush1.msra.mxu0 0.0
    %443 = vmatprep.subr.mxu0 0.0
    %444 = vmatpush1.msra.mxu0 0.0
    %445 = vmatprep.subr.mxu0 0.0
    %446 = vmatpush1.msra.mxu0 0.0
    %447 = vmatprep.subr.mxu0 0.0
    %448 = vmatpush1.msra.mxu0 0.0
    %449 = vmatprep.subr.mxu0 0.0
    %450 = vmatpush1.msra.mxu0 0.0
    %451 = vmatprep.subr.mxu0 0.0
    %452 = vmatpush1.msra.mxu0 0.0
    %453 = vmatprep.subr.mxu0 0.0
    %454 = vmatpush1.msra.mxu0 0.0
    %455 = vmatprep.subr.mxu0 0.0
    %456 = vmatpush1.msra.mxu0 0.0
    %457 = vmatprep.subr.mxu0 0.0
    %458 = vmatpush1.msra.mxu0 0.0
    %459 = vmatprep.subr.mxu0 0.0
    %460 = vmatpush1.msra.mxu0 0.0
    %461 = vmatprep.subr.mxu0 0.0
    %462 = vmatpush1.msra.mxu0 0.0
    %463 = vmatprep.subr.mxu0 0.0
    %464 = vmatpush1.msra.mxu0 0.0
    %465 = vmatprep.subr.mxu0 0.0
    %466 = vmatpush1.msra.mxu0 0.0
    %467 = vmatprep.subr.mxu0 0.0
    %468 = vmatpush1.msra.mxu0 0.0
    %469 = vmatprep.subr.mxu0 0.0
    %470 = vmatpush1.msra.mxu0 0.0
    %471 = vmatprep.subr.mxu0 0.0
    %472 = vmatpush1.msra.mxu0 0.0
    %473 = vmatprep.subr.mxu0 0.0
    %474 = vmatpush1.msra.mxu0 0.0
    %475 = vmatprep.subr.mxu0 0.0
    %476 = vmatpush1.msra.mxu0 0.0
    %477 = vmatprep.subr.mxu0 0.0
    %478 = vmatpush1.msra.mxu0 0.0
    %479 = vmatprep.subr.mxu0 0.0
    %480 = vmatpush1.msra.mxu0 0.0
    %481 = vmatprep.subr.mxu0 0.0
    %482 = vmatpush1.msra.mxu0 0.0
    %483 = vmatprep.mubr.f32.mxu0 0.0
    %484 = vmatmul.mubr.f32.gmra.mrb[0].mxu0 %v417
    %v485 = vpop.f32.mrb[0].mxu0
    %v486 = vadd.f32 0.0, %v485
    %v487 = vpop.f32.mrb[0].mxu0
    %488 = vdwg.mxu0
    %490 = vrot.lane.b32.xlu0 %v486, 4
    %v491 = vpop.permute.xlu0 %490
    %v493 = vsel %vm136, %v412, %v491
    %vm494 = vcmask 60416
    %495 = vst.msk [vmem:[#allocation8] sm:$0xf] %vm494, %v493
    %s496 = scalar_lea.vmem [#allocation2], 16
    %v497 = vld [vmem:[%s496] sm:$0xff]
    %v498 = vld [vmem:[%s496 + $0x8] sm:$0xff]
    %s499 = scalar_lea.vmem [#allocation5], 16
    %v500 = vld [vmem:[%s499] sm:$0xff]
    %v501 = vld [vmem:[%s499 + $0x8] sm:$0xff]
    %v503 = vsel %vm51, %v497, 0
    %v506 = vsel %vm51, %v498, 0
    %508 = vmatprep.subr.mxu0 0.0
    %509 = vmatpush1.xpose.msra.mxu0 %v59
    %510 = vmatprep.subr.mxu0 0.0
    %511 = vmatpush1.xpose.msra.mxu0 0.0
    %512 = vmatprep.subr.mxu0 0.0
    %513 = vmatpush1.xpose.msra.mxu0 0.0
    %514 = vmatprep.subr.mxu0 0.0
    %515 = vmatpush1.xpose.msra.mxu0 0.0
    %516 = vmatprep.subr.mxu0 0.0
    %517 = vmatpush1.xpose.msra.mxu0 0.0
    %518 = vmatprep.subr.mxu0 0.0
    %519 = vmatpush1.xpose.msra.mxu0 0.0
    %520 = vmatprep.subr.mxu0 0.0
    %521 = vmatpush1.xpose.msra.mxu0 0.0
    %522 = vmatprep.subr.mxu0 0.0
    %523 = vmatpush1.xpose.msra.mxu0 0.0
    %524 = vmatprep.subr.mxu0 0.0
    %525 = vmatpush1.xpose.msra.mxu0 0.0
    %526 = vmatprep.subr.mxu0 0.0
    %527 = vmatpush1.xpose.msra.mxu0 0.0
    %528 = vmatprep.subr.mxu0 0.0
    %529 = vmatpush1.xpose.msra.mxu0 0.0
    %530 = vmatprep.subr.mxu0 0.0
    %531 = vmatpush1.xpose.msra.mxu0 0.0
    %532 = vmatprep.subr.mxu0 0.0
    %533 = vmatpush1.xpose.msra.mxu0 0.0
    %534 = vmatprep.subr.mxu0 0.0
    %535 = vmatpush1.xpose.msra.mxu0 0.0
    %536 = vmatprep.subr.mxu0 0.0
    %537 = vmatpush1.xpose.msra.mxu0 0.0
    %538 = vmatprep.subr.mxu0 0.0
    %539 = vmatpush1.xpose.msra.mxu0 0.0
    %540 = vmatprep.subr.mxu0 0.0
    %541 = vmatpush1.xpose.msra.mxu0 0.0
    %542 = vmatprep.subr.mxu0 0.0
    %543 = vmatpush1.xpose.msra.mxu0 0.0
    %544 = vmatprep.subr.mxu0 0.0
    %545 = vmatpush1.xpose.msra.mxu0 0.0
    %546 = vmatprep.subr.mxu0 0.0
    %547 = vmatpush1.xpose.msra.mxu0 0.0
    %548 = vmatprep.subr.mxu0 0.0
    %549 = vmatpush1.xpose.msra.mxu0 0.0
    %550 = vmatprep.subr.mxu0 0.0
    %551 = vmatpush1.xpose.msra.mxu0 0.0
    %552 = vmatprep.subr.mxu0 0.0
    %553 = vmatpush1.xpose.msra.mxu0 0.0
    %554 = vmatprep.subr.mxu0 0.0
    %555 = vmatpush1.xpose.msra.mxu0 0.0
    %556 = vmatprep.subr.mxu0 0.0
    %557 = vmatpush1.xpose.msra.mxu0 0.0
    %558 = vmatprep.subr.mxu0 0.0
    %559 = vmatpush1.xpose.msra.mxu0 0.0
    %560 = vmatprep.subr.mxu0 0.0
    %561 = vmatpush1.xpose.msra.mxu0 0.0
    %562 = vmatprep.subr.mxu0 0.0
    %563 = vmatpush1.xpose.msra.mxu0 0.0
    %564 = vmatprep.subr.mxu0 0.0
    %565 = vmatpush1.xpose.msra.mxu0 0.0
    %566 = vmatprep.subr.mxu0 0.0
    %567 = vmatpush1.xpose.msra.mxu0 0.0
    %568 = vmatprep.subr.mxu0 0.0
    %569 = vmatpush1.xpose.msra.mxu0 0.0
    %570 = vmatprep.subr.mxu0 0.0
    %571 = vmatpush1.xpose.msra.mxu0 0.0
    %572 = vmatprep.mubr.f32.mxu0 0.0
    %573 = vmatmul.mubr.f32.gmra.mrb[0].mxu0 %v503
    %v574 = vpop.f32.mrb[0].mxu0
    %v575 = vadd.f32 0.0, %v574
    %v576 = vpop.f32.mrb[0].mxu0
    %577 = vmatprep.mubr.f32.mxu0 0.0
    %578 = vmatmul.mubr.f32.gmra.mrb[0].mxu0 %v506
    %v579 = vpop.f32.mrb[0].mxu0
    %v580 = vadd.f32 0.0, %v579
    %v581 = vpop.f32.mrb[0].mxu0
    %582 = vdwg.mxu0
    %v583 = vsel %vm136, %v575, -inf
    %v584 = vsel %vm136, %v580, -inf
    %v585 = vmax.f32 %v583, %v584
    %v586 = vrot.slane %v585, 4
    %v587 = vmax.f32 %v585, %v586
    %v588 = vrot.slane %v587, 2
    %v589 = vmax.f32 %v587, %v588
    %v590 = vrot.slane %v589, 1
    %v591 = vmax.f32 %v589, %v590
    %v592 = vsub.f32 %v575, %v591
    %v593 = vsub.f32 %v580, %v591
    %v594 = vmul.f32 %v592, 1.442695
    %v595 = vpow.pop %v594
    %v596 = vmul.f32 %v593, 1.442695
    %v597 = vpow.pop %v596
    %v598 = vsel %vm136, %v595, 0.0
    %v599 = vsel %vm136, %v597, 0.0
    %v600 = vadd.f32 %v598, %v599
    %v601 = vrot.slane %v600, 4
    %v602 = vadd.f32 %v600, %v601
    %v603 = vrot.slane %v602, 2
    %v604 = vadd.f32 %v602, %v603
    %v605 = vrot.slane %v604, 1
    %v606 = vadd.f32 %v604, %v605
    %v607 = vrcp.pop %v606
    %v608 = vmul.f32 %v595, %v607
    %v609 = vmul.f32 %v597, %v607
    %610 = vxpose.xlu0.b32.start [1/16] %v608, 128
    %611 = vxpose.xlu0.b32.cont [2/16] %v609, 128
    %612 = vxpose.xlu0.b32.cont [3/16] 0.0, 128
    %613 = vxpose.xlu0.b32.cont [4/16] 0.0, 128
    %614 = vxpose.xlu0.b32.cont [5/16] 0.0, 128
    %615 = vxpose.xlu0.b32.cont [6/16] 0.0, 128
    %616 = vxpose.xlu0.b32.cont [7/16] 0.0, 128
    %617 = vxpose.xlu0.b32.cont [8/16] 0.0, 128
    %618 = vxpose.xlu0.b32.cont [9/16] 0.0, 128
    %619 = vxpose.xlu0.b32.cont [10/16] 0.0, 128
    %620 = vxpose.xlu0.b32.cont [11/16] 0.0, 128
    %621 = vxpose.xlu0.b32.cont [12/16] 0.0, 128
    %622 = vxpose.xlu0.b32.cont [13/16] 0.0, 128
    %623 = vxpose.xlu0.b32.cont [14/16] 0.0, 128
    %624 = vxpose.xlu0.b32.cont [15/16] 0.0, 128
    %625 = vxpose.xlu0.b32.end [16/16] 0.0, 128
    %v626 = vpop.trf.xlu0
    %v627 = vpop.trf.xlu0
    %v628 = vpop.trf.xlu0
    %v629 = vpop.trf.xlu0
    %v630 = vpop.trf.xlu0
    %v631 = vpop.trf.xlu0
    %v632 = vpop.trf.xlu0
    %v633 = vpop.trf.xlu0
    %v634 = vpop.trf.xlu0
    %v635 = vpop.trf.xlu0
    %v636 = vpop.trf.xlu0
    %v637 = vpop.trf.xlu0
    %v638 = vpop.trf.xlu0
    %v639 = vpop.trf.xlu0
    %v640 = vpop.trf.xlu0
    %v641 = vpop.trf.xlu0
    %v643 = vsel %vm196, %v626, 0
    %645 = vmatprep.subr.mxu0 0.0
    %646 = vmatpush1.msra.mxu0 %v497
    %647 = vmatprep.subr.mxu0 0.0
    %648 = vmatpush1.msra.mxu0 %v498
    %649 = vmatprep.subr.mxu0 0.0
    %650 = vmatpush1.msra.mxu0 0.0
    %651 = vmatprep.subr.mxu0 0.0
    %652 = vmatpush1.msra.mxu0 0.0
    %653 = vmatprep.subr.mxu0 0.0
    %654 = vmatpush1.msra.mxu0 0.0
    %655 = vmatprep.subr.mxu0 0.0
    %656 = vmatpush1.msra.mxu0 0.0
    %657 = vmatprep.subr.mxu0 0.0
    %658 = vmatpush1.msra.mxu0 0.0
    %659 = vmatprep.subr.mxu0 0.0
    %660 = vmatpush1.msra.mxu0 0.0
    %661 = vmatprep.subr.mxu0 0.0
    %662 = vmatpush1.msra.mxu0 0.0
    %663 = vmatprep.subr.mxu0 0.0
    %664 = vmatpush1.msra.mxu0 0.0
    %665 = vmatprep.subr.mxu0 0.0
    %666 = vmatpush1.msra.mxu0 0.0
    %667 = vmatprep.subr.mxu0 0.0
    %668 = vmatpush1.msra.mxu0 0.0
    %669 = vmatprep.subr.mxu0 0.0
    %670 = vmatpush1.msra.mxu0 0.0
    %671 = vmatprep.subr.mxu0 0.0
    %672 = vmatpush1.msra.mxu0 0.0
    %673 = vmatprep.subr.mxu0 0.0
    %674 = vmatpush1.msra.mxu0 0.0
    %675 = vmatprep.subr.mxu0 0.0
    %676 = vmatpush1.msra.mxu0 0.0
    %677 = vmatprep.subr.mxu0 0.0
    %678 = vmatpush1.msra.mxu0 0.0
    %679 = vmatprep.subr.mxu0 0.0
    %680 = vmatpush1.msra.mxu0 0.0
    %681 = vmatprep.subr.mxu0 0.0
    %682 = vmatpush1.msra.mxu0 0.0
    %683 = vmatprep.subr.mxu0 0.0
    %684 = vmatpush1.msra.mxu0 0.0
    %685 = vmatprep.subr.mxu0 0.0
    %686 = vmatpush1.msra.mxu0 0.0
    %687 = vmatprep.subr.mxu0 0.0
    %688 = vmatpush1.msra.mxu0 0.0
    %689 = vmatprep.subr.mxu0 0.0
    %690 = vmatpush1.msra.mxu0 0.0
    %691 = vmatprep.subr.mxu0 0.0
    %692 = vmatpush1.msra.mxu0 0.0
    %693 = vmatprep.subr.mxu0 0.0
    %694 = vmatpush1.msra.mxu0 0.0
    %695 = vmatprep.subr.mxu0 0.0
    %696 = vmatpush1.msra.mxu0 0.0
    %697 = vmatprep.subr.mxu0 0.0
    %698 = vmatpush1.msra.mxu0 0.0
    %699 = vmatprep.subr.mxu0 0.0
    %700 = vmatpush1.msra.mxu0 0.0
    %701 = vmatprep.subr.mxu0 0.0
    %702 = vmatpush1.msra.mxu0 0.0
    %703 = vmatprep.subr.mxu0 0.0
    %704 = vmatpush1.msra.mxu0 0.0
    %705 = vmatprep.subr.mxu0 0.0
    %706 = vmatpush1.msra.mxu0 0.0
    %707 = vmatprep.subr.mxu0 0.0
    %708 = vmatpush1.msra.mxu0 0.0
    %709 = vmatprep.mubr.f32.mxu0 0.0
    %710 = vmatmul.mubr.f32.gmra.mrb[0].mxu0 %v643
    %v711 = vpop.f32.mrb[0].mxu0
    %v712 = vadd.f32 0.0, %v711
    %v713 = vpop.f32.mrb[0].mxu0
    %714 = vdwg.mxu0
    %s715 = scalar_lea.vmem [#allocation7], 4
    %716 = vst.msk [vmem:[%s715] sm:$0xf] %vm270, %v712
    %717 = vmatprep.subr.mxu0 0.0
    %718 = vmatpush1.msra.mxu0 %v500
    %719 = vmatprep.subr.mxu0 0.0
    %720 = vmatpush1.msra.mxu0 %v501
    %721 = vmatprep.subr.mxu0 0.0
    %722 = vmatpush1.msra.mxu0 0.0
    %723 = vmatprep.subr.mxu0 0.0
    %724 = vmatpush1.msra.mxu0 0.0
    %725 = vmatprep.subr.mxu0 0.0
    %726 = vmatpush1.msra.mxu0 0.0
    %727 = vmatprep.subr.mxu0 0.0
    %728 = vmatpush1.msra.mxu0 0.0
    %729 = vmatprep.subr.mxu0 0.0
    %730 = vmatpush1.msra.mxu0 0.0
    %731 = vmatprep.subr.mxu0 0.0
    %732 = vmatpush1.msra.mxu0 0.0
    %733 = vmatprep.subr.mxu0 0.0
    %734 = vmatpush1.msra.mxu0 0.0
    %735 = vmatprep.subr.mxu0 0.0
    %736 = vmatpush1.msra.mxu0 0.0
    %737 = vmatprep.subr.mxu0 0.0
    %738 = vmatpush1.msra.mxu0 0.0
    %739 = vmatprep.subr.mxu0 0.0
    %740 = vmatpush1.msra.mxu0 0.0
    %741 = vmatprep.subr.mxu0 0.0
    %742 = vmatpush1.msra.mxu0 0.0
    %743 = vmatprep.subr.mxu0 0.0
    %744 = vmatpush1.msra.mxu0 0.0
    %745 = vmatprep.subr.mxu0 0.0
    %746 = vmatpush1.msra.mxu0 0.0
    %747 = vmatprep.subr.mxu0 0.0
    %748 = vmatpush1.msra.mxu0 0.0
    %749 = vmatprep.subr.mxu0 0.0
    %750 = vmatpush1.msra.mxu0 0.0
    %751 = vmatprep.subr.mxu0 0.0
    %752 = vmatpush1.msra.mxu0 0.0
    %753 = vmatprep.subr.mxu0 0.0
    %754 = vmatpush1.msra.mxu0 0.0
    %755 = vmatprep.subr.mxu0 0.0
    %756 = vmatpush1.msra.mxu0 0.0
    %757 = vmatprep.subr.mxu0 0.0
    %758 = vmatpush1.msra.mxu0 0.0
    %759 = vmatprep.subr.mxu0 0.0
    %760 = vmatpush1.msra.mxu0 0.0
    %761 = vmatprep.subr.mxu0 0.0
    %762 = vmatpush1.msra.mxu0 0.0
    %763 = vmatprep.subr.mxu0 0.0
    %764 = vmatpush1.msra.mxu0 0.0
    %765 = vmatprep.subr.mxu0 0.0
    %766 = vmatpush1.msra.mxu0 0.0
    %767 = vmatprep.subr.mxu0 0.0
    %768 = vmatpush1.msra.mxu0 0.0
    %769 = vmatprep.subr.mxu0 0.0
    %770 = vmatpush1.msra.mxu0 0.0
    %771 = vmatprep.subr.mxu0 0.0
    %772 = vmatpush1.msra.mxu0 0.0
    %773 = vmatprep.subr.mxu0 0.0
    %774 = vmatpush1.msra.mxu0 0.0
    %775 = vmatprep.subr.mxu0 0.0
    %776 = vmatpush1.msra.mxu0 0.0
    %777 = vmatprep.subr.mxu0 0.0
    %778 = vmatpush1.msra.mxu0 0.0
    %779 = vmatprep.subr.mxu0 0.0
    %780 = vmatpush1.msra.mxu0 0.0
    %781 = vmatprep.mubr.f32.mxu0 0.0
    %782 = vmatmul.mubr.f32.gmra.mrb[0].mxu0 %v643
    %v783 = vpop.f32.mrb[0].mxu0
    %v784 = vadd.f32 0.0, %v783
    %v785 = vpop.f32.mrb[0].mxu0
    %786 = vdwg.mxu0
    %v788 = vsel %vm196, %v784, 0
    %790 = vmatprep.subr.mxu0 0.0
    %791 = vmatpush1.msra.mxu0 %v608
    %792 = vmatprep.subr.mxu0 0.0
    %793 = vmatpush1.msra.mxu0 %v609
    %794 = vmatprep.subr.mxu0 0.0
    %795 = vmatpush1.msra.mxu0 0.0
    %796 = vmatprep.subr.mxu0 0.0
    %797 = vmatpush1.msra.mxu0 0.0
    %798 = vmatprep.subr.mxu0 0.0
    %799 = vmatpush1.msra.mxu0 0.0
    %800 = vmatprep.subr.mxu0 0.0
    %801 = vmatpush1.msra.mxu0 0.0
    %802 = vmatprep.subr.mxu0 0.0
    %803 = vmatpush1.msra.mxu0 0.0
    %804 = vmatprep.subr.mxu0 0.0
    %805 = vmatpush1.msra.mxu0 0.0
    %806 = vmatprep.subr.mxu0 0.0
    %807 = vmatpush1.msra.mxu0 0.0
    %808 = vmatprep.subr.mxu0 0.0
    %809 = vmatpush1.msra.mxu0 0.0
    %810 = vmatprep.subr.mxu0 0.0
    %811 = vmatpush1.msra.mxu0 0.0
    %812 = vmatprep.subr.mxu0 0.0
    %813 = vmatpush1.msra.mxu0 0.0
    %814 = vmatprep.subr.mxu0 0.0
    %815 = vmatpush1.msra.mxu0 0.0
    %816 = vmatprep.subr.mxu0 0.0
    %817 = vmatpush1.msra.mxu0 0.0
    %818 = vmatprep.subr.mxu0 0.0
    %819 = vmatpush1.msra.mxu0 0.0
    %820 = vmatprep.subr.mxu0 0.0
    %821 = vmatpush1.msra.mxu0 0.0
    %822 = vmatprep.subr.mxu0 0.0
    %823 = vmatpush1.msra.mxu0 0.0
    %824 = vmatprep.subr.mxu0 0.0
    %825 = vmatpush1.msra.mxu0 0.0
    %826 = vmatprep.subr.mxu0 0.0
    %827 = vmatpush1.msra.mxu0 0.0
    %828 = vmatprep.subr.mxu0 0.0
    %829 = vmatpush1.msra.mxu0 0.0
    %830 = vmatprep.subr.mxu0 0.0
    %831 = vmatpush1.msra.mxu0 0.0
    %832 = vmatprep.subr.mxu0 0.0
    %833 = vmatpush1.msra.mxu0 0.0
    %834 = vmatprep.subr.mxu0 0.0
    %835 = vmatpush1.msra.mxu0 0.0
    %836 = vmatprep.subr.mxu0 0.0
    %837 = vmatpush1.msra.mxu0 0.0
    %838 = vmatprep.subr.mxu0 0.0
    %839 = vmatpush1.msra.mxu0 0.0
    %840 = vmatprep.subr.mxu0 0.0
    %841 = vmatpush1.msra.mxu0 0.0
    %842 = vmatprep.subr.mxu0 0.0
    %843 = vmatpush1.msra.mxu0 0.0
    %844 = vmatprep.subr.mxu0 0.0
    %845 = vmatpush1.msra.mxu0 0.0
    %846 = vmatprep.subr.mxu0 0.0
    %847 = vmatpush1.msra.mxu0 0.0
    %848 = vmatprep.subr.mxu0 0.0
    %849 = vmatpush1.msra.mxu0 0.0
    %850 = vmatprep.subr.mxu0 0.0
    %851 = vmatpush1.msra.mxu0 0.0
    %852 = vmatprep.subr.mxu0 0.0
    %853 = vmatpush1.msra.mxu0 0.0
    %854 = vmatprep.mubr.f32.mxu0 0.0
    %855 = vmatmul.mubr.f32.gmra.mrb[0].mxu0 %v788
    %v856 = vpop.f32.mrb[0].mxu0
    %v857 = vadd.f32 0.0, %v856
    %v858 = vpop.f32.mrb[0].mxu0
    %859 = vdwg.mxu0
    %860 = vrot.lane.b32.xlu0 %v784, 112
    %v861 = vpop.permute.xlu0 %860
    %v862 = vsel %vm196, %v861, 0
    %864 = vmatprep.subr.mxu0 0.0
    %865 = vmatpush1.msra.mxu0 %v608
    %866 = vmatprep.subr.mxu0 0.0
    %867 = vmatpush1.msra.mxu0 %v609
    %868 = vmatprep.subr.mxu0 0.0
    %869 = vmatpush1.msra.mxu0 0.0
    %870 = vmatprep.subr.mxu0 0.0
    %871 = vmatpush1.msra.mxu0 0.0
    %872 = vmatprep.subr.mxu0 0.0
    %873 = vmatpush1.msra.mxu0 0.0
    %874 = vmatprep.subr.mxu0 0.0
    %875 = vmatpush1.msra.mxu0 0.0
    %876 = vmatprep.subr.mxu0 0.0
    %877 = vmatpush1.msra.mxu0 0.0
    %878 = vmatprep.subr.mxu0 0.0
    %879 = vmatpush1.msra.mxu0 0.0
    %880 = vmatprep.subr.mxu0 0.0
    %881 = vmatpush1.msra.mxu0 0.0
    %882 = vmatprep.subr.mxu0 0.0
    %883 = vmatpush1.msra.mxu0 0.0
    %884 = vmatprep.subr.mxu0 0.0
    %885 = vmatpush1.msra.mxu0 0.0
    %886 = vmatprep.subr.mxu0 0.0
    %887 = vmatpush1.msra.mxu0 0.0
    %888 = vmatprep.subr.mxu0 0.0
    %889 = vmatpush1.msra.mxu0 0.0
    %890 = vmatprep.subr.mxu0 0.0
    %891 = vmatpush1.msra.mxu0 0.0
    %892 = vmatprep.subr.mxu0 0.0
    %893 = vmatpush1.msra.mxu0 0.0
    %894 = vmatprep.subr.mxu0 0.0
    %895 = vmatpush1.msra.mxu0 0.0
    %896 = vmatprep.subr.mxu0 0.0
    %897 = vmatpush1.msra.mxu0 0.0
    %898 = vmatprep.subr.mxu0 0.0
    %899 = vmatpush1.msra.mxu0 0.0
    %900 = vmatprep.subr.mxu0 0.0
    %901 = vmatpush1.msra.mxu0 0.0
    %902 = vmatprep.subr.mxu0 0.0
    %903 = vmatpush1.msra.mxu0 0.0
    %904 = vmatprep.subr.mxu0 0.0
    %905 = vmatpush1.msra.mxu0 0.0
    %906 = vmatprep.subr.mxu0 0.0
    %907 = vmatpush1.msra.mxu0 0.0
    %908 = vmatprep.subr.mxu0 0.0
    %909 = vmatpush1.msra.mxu0 0.0
    %910 = vmatprep.subr.mxu0 0.0
    %911 = vmatpush1.msra.mxu0 0.0
    %912 = vmatprep.subr.mxu0 0.0
    %913 = vmatpush1.msra.mxu0 0.0
    %914 = vmatprep.subr.mxu0 0.0
    %915 = vmatpush1.msra.mxu0 0.0
    %916 = vmatprep.subr.mxu0 0.0
    %917 = vmatpush1.msra.mxu0 0.0
    %918 = vmatprep.subr.mxu0 0.0
    %919 = vmatpush1.msra.mxu0 0.0
    %920 = vmatprep.subr.mxu0 0.0
    %921 = vmatpush1.msra.mxu0 0.0
    %922 = vmatprep.subr.mxu0 0.0
    %923 = vmatpush1.msra.mxu0 0.0
    %924 = vmatprep.subr.mxu0 0.0
    %925 = vmatpush1.msra.mxu0 0.0
    %926 = vmatprep.subr.mxu0 0.0
    %927 = vmatpush1.msra.mxu0 0.0
    %928 = vmatprep.mubr.f32.mxu0 0.0
    %929 = vmatmul.mubr.f32.gmra.mrb[0].mxu0 %v862
    %v930 = vpop.f32.mrb[0].mxu0
    %v931 = vadd.f32 0.0, %v930
    %v932 = vpop.f32.mrb[0].mxu0
    %933 = vdwg.mxu0
    %935 = vrot.lane.b32.xlu0 %v931, 4
    %v936 = vpop.permute.xlu0 %935
    %v938 = vsel %vm136, %v857, %v936
    %s939 = scalar_lea.vmem [#allocation8], 4
    %940 = vst.msk [vmem:[%s939] sm:$0xf] %vm494, %v938
    // Predicated region
    $region22: #{tpu_custom_call.1} parent=1 // pred_check
      _
    $region23: #{tpu_custom_call.1} parent=1 // pred_check_branch
      %942 = sbr.rel (0) target = $region25
    $region24: #{tpu_custom_call.1} parent=1 // pred_region
      %s944 = ssub.s32 128, 128
      %945 = vsyncadd [#allocation4], %s944
      %s946 = sshll.u32 [#allocation7], 4
      %s947 = int_to_ptr.vmem [resolvable:$true] %s946
      %952 = dma.vmem_to_hbm [thread:$0]  %s947, 128, %s3, [#allocation4], 64, 64, 4
    $region25: #{tpu_custom_call.1} parent=1 // pred_fallthru
      _
    // Predicated region
    $region26: #{tpu_custom_call.1} parent=1 // pred_check
      _
    $region27: #{tpu_custom_call.1} parent=1 // pred_check_branch
      %954 = sbr.rel (0) target = $region29
    $region28: #{tpu_custom_call.1} parent=1 // pred_region
      %s956 = ssub.s32 128, 128
      %957 = vsyncadd [#allocation9], %s956
      %s958 = sshll.u32 [#allocation8], 4
      %s959 = int_to_ptr.vmem [resolvable:$true] %s958
      %964 = dma.vmem_to_hbm [thread:$0]  %s959, 128, %s4, [#allocation9], 64, 64, 4
    $region29: #{tpu_custom_call.1} parent=1 // pred_fallthru
      _
    // Predicated region
    $region30: #{tpu_custom_call.1} parent=1 // pred_check
      _
    $region31: #{tpu_custom_call.1} parent=1 // pred_check_branch
      %966 = sbr.rel (0) target = $region33
    $region32: #{tpu_custom_call.1} parent=1 // pred_region
      %967 = dma.done [#allocation4], 128
    $region33: #{tpu_custom_call.1} parent=1 // pred_fallthru
      _
    // Predicated region
    $region34: #{tpu_custom_call.1} parent=1 // pred_check
      _
    $region35: #{tpu_custom_call.1} parent=1 // pred_check_branch
      %969 = sbr.rel (0) target = $region37
    $region36: #{tpu_custom_call.1} parent=1 // pred_region
      %970 = dma.done [#allocation9], 128
    $region37: #{tpu_custom_call.1} parent=1 // pred_fallthru
      _
    %971 = vsyncpa [#allocation3], 1
    %972 = vsyncpa [#allocation6], 1
    %973 = vsyncpa [#allocation4], 1
    %974 = vsyncpa [#allocation9], 1

</llo_original>
